<compile_context>
chip_gen: v7x
topology: tpu7x:2x2x1
jax: 0.10.0
libtpu: 0.0.40
codegen_flags: <defaults>
</compile_context>

<pallas_src>
import functools

import jax
import jax.numpy as jnp
from jax import lax
from jax.experimental import pallas as pl
from jax.experimental.pallas import tpu as pltpu


# ---------------------------------------------------------------------------
# Kernel
# ---------------------------------------------------------------------------
def _mlp_lagrange_kernel(obs_ref, w1_ref, b1_ref, w2_ref, b2_ref,
                         w3_ref, b3_ref, out_ref, *, act_dtype):
    mm_dtype = w1_ref.dtype                       # bf16 (or f32) MXU inputs
    x = obs_ref[...]                              # (TB, obs_dim) f32

    # fc1 + tanh  (MXU f32 accumulate; activation in act_dtype)
    h1 = jnp.dot(x.astype(mm_dtype), w1_ref[...],
                 preferred_element_type=jnp.float32)
    h1 = jnp.tanh((h1 + b1_ref[...]).astype(act_dtype))        # (TB, hid)

    # fc2 + tanh
    h2 = jnp.dot(h1.astype(mm_dtype), w2_ref[...],
                 preferred_element_type=jnp.float32)
    h2 = jnp.tanh((h2 + b2_ref[...]).astype(act_dtype))        # (TB, hid)

    # fc3 (out_features == 1): M=1 MXU contraction over hid that emits the
    # lane-dense (1, TB) row directly — no (TB,1)->(1,TB) relayout.
    z = lax.dot_general(
        w3_ref[...], h2.astype(mm_dtype),
        dimension_numbers=(((1,), (1,)), ((), ())),
        preferred_element_type=jnp.float32)                    # (1, TB) f32
    z = z + b3_ref[0, 0]                                       # scalar bias (SMEM)

    # softplus (numerically stable, matches F.softplus)
    sp = jnp.maximum(z, 0.0) + jnp.log1p(jnp.exp(-jnp.abs(z)))
    out_ref[...] = sp.astype(out_ref.dtype)                    # unmasked (1, TB) store


# ---------------------------------------------------------------------------
# Wrapper
# ---------------------------------------------------------------------------
def _round_up(x, m):
    return ((x + m - 1) // m) * m


def _auto_batch_tile(B):
    # Single grid step for small batches; otherwise aim for >= 2 tiles so the
    # "parallel" grid axis feeds both v7x TensorCores, capped at 4096 rows/tile
    # (~10 MiB live VMEM with double-buffered obs + f32/bf16 intermediates).
    cap = 4096
    if B <= 1024:
        return _round_up(B, 8)
    return min(_round_up(pl.cdiv(B, 2), 128), cap)


def _vmem_limit_bytes(batch_tile):
    # ~2.5 KB live VMEM per batch row (obs lane-padded 32->128, double
    # buffered, plus f32/bf16 intermediates); weights are negligible.
    est = batch_tile * 2560 + (1 << 20)
    # >= per-chip scoped defaults (16/32 MiB), well below v7x's 64 MiB physical.
    return int(min(max(2 * est, 32 << 20), 56 << 20))


def _default_act_dtype():
    try:
        kind = jax.devices()[0].device_kind.lower()
    except Exception:
        return jnp.float32
    # bf16 tanh halves EUP pushes on v6e/v7x; v5e's EUP has no bf16 path.
    if any(tag in kind for tag in ("v6", "v7", "tpu7")):
        return jnp.bfloat16
    return jnp.float32


def mlp_lagrange_forward(obs, params, *, batch_tile=None,
                         matmul_dtype=jnp.bfloat16, act_dtype=None):
    """obs: (B, obs_dim) float32 -> (B,) float32."""
    w1, b1, w2, b2, w3, b3 = params
    B, obs_dim = obs.shape
    hid = w1.shape[1]

    if act_dtype is None:
        act_dtype = _default_act_dtype()
    if batch_tile is None:
        batch_tile = _auto_batch_tile(B)
    num_tiles = pl.cdiv(B, batch_tile)

    # No wrapper padding of obs: the ragged last block is handled as a Pallas
    # boundary block; its undefined rows stay row-local and are sliced off.
    w1m = w1.astype(matmul_dtype)
    w2m = w2.astype(matmul_dtype)
    w3_row = w3.reshape(1, hid).astype(matmul_dtype)
    b1r = b1.reshape(1, hid).astype(jnp.float32)
    b2r = b2.reshape(1, hid).astype(jnp.float32)
    b3s = b3.reshape(1, 1).astype(jnp.float32)        # scalar -> SMEM

    kernel = functools.partial(_mlp_lagrange_kernel, act_dtype=act_dtype)

    out2d = pl.pallas_call(
        kernel,
        out_shape=jax.ShapeDtypeStruct((num_tiles, batch_tile), jnp.float32),
        grid=(num_tiles,),
        in_specs=[
            pl.BlockSpec((batch_tile, obs_dim), lambda i: (i, 0)),   # obs tile
            pl.BlockSpec((obs_dim, hid), lambda i: (0, 0)),          # w1 (resident)
            pl.BlockSpec((1, hid), lambda i: (0, 0)),                # b1
            pl.BlockSpec((hid, hid), lambda i: (0, 0)),              # w2
            pl.BlockSpec((1, hid), lambda i: (0, 0)),                # b2
            pl.BlockSpec((1, hid), lambda i: (0, 0)),                # w3 row
            pl.BlockSpec(memory_space=pltpu.MemorySpace.SMEM),       # b3 scalar
        ],
        out_specs=pl.BlockSpec((1, batch_tile), lambda i: (i, 0)),   # lane-dense
        compiler_params=pltpu.CompilerParams(
            dimension_semantics=("parallel",),       # megacore / v7x 2-TC sharding
            vmem_limit_bytes=_vmem_limit_bytes(batch_tile)),
    )(obs, w1m, b1r, w2m, b2r, w3_row, b3s)

    return out2d.reshape(-1)[:B]                     # torch.squeeze(v, -1)


# ---------------------------------------------------------------------------
# Params / reference
# ---------------------------------------------------------------------------
def init_params(key, obs_dim, hid_dim, lagrange_init=1.0):
    """PyTorch-Linear-style init (uniform(-1/sqrt(fan_in), 1/sqrt(fan_in))),
    with fc3.bias = lagrange_init (nn.init.constant_)."""
    k1, k2, k3, k4, k5 = jax.random.split(key, 5)

    def uni(k, shape, fan_in):
        bound = 1.0 / jnp.sqrt(jnp.float32(fan_in))
        return jax.random.uniform(k, shape, jnp.float32, -bound, bound)

    w1 = uni(k1, (obs_dim, hid_dim), obs_dim)
    b1 = uni(k2, (1, hid_dim), obs_dim)
    w2 = uni(k3, (hid_dim, hid_dim), hid_dim)
    b2 = uni(k4, (1, hid_dim), hid_dim)
    w3 = uni(k5, (hid_dim, 1), hid_dim)
    b3 = jnp.full((1, 1), lagrange_init, jnp.float32)
    return (w1, b1, w2, b2, w3, b3)


def reference_forward(obs, params):
    w1, b1, w2, b2, w3, b3 = params
    x = jnp.tanh(obs @ w1 + b1)
    x = jnp.tanh(x @ w2 + b2)
    z = x @ w3 + b3
    return jnp.squeeze(jax.nn.softplus(z), -1)


# ---------------------------------------------------------------------------
# Self-test
# ---------------------------------------------------------------------------
if __name__ == "__main__":
    key = jax.random.PRNGKey(0)
    k_obs1, k_obs2, k_obs3, k_par = jax.random.split(key, 4)

    OBS_DIM, HID = 32, 64
    params = init_params(k_par, OBS_DIM, HID, lagrange_init=1.0)

    # Case 1: tiny batch -> single grid step covering the whole batch.
    B1 = 8
    obs1 = jax.random.normal(k_obs1, (B1, OBS_DIM), jnp.float32)
    out1 = jax.block_until_ready(mlp_lagrange_forward(obs1, params))
    ref1 = reference_forward(obs1, params)
    assert out1.shape == (B1,)
    assert jnp.allclose(out1, ref1, atol=3e-2, rtol=3e-2), \
        float(jnp.max(jnp.abs(out1 - ref1)))

    # Case 2: explicit small tile -> 3 grid steps with a ragged last block
    # (weight residency across steps, no wrapper padding).
    B2 = 300
    obs2 = jax.random.normal(k_obs2, (B2, OBS_DIM), jnp.float32)
    out2 = jax.block_until_ready(
        mlp_lagrange_forward(obs2, params, batch_tile=128))
    ref2 = reference_forward(obs2, params)
    assert out2.shape == (B2,)
    assert jnp.allclose(out2, ref2, atol=3e-2, rtol=3e-2), \
        float(jnp.max(jnp.abs(out2 - ref2)))

    # Case 3: auto tile selection -> 2 parallel tiles (ragged second tile).
    B3 = 2500
    obs3 = jax.random.normal(k_obs3, (B3, OBS_DIM), jnp.float32)
    out3 = jax.block_until_ready(mlp_lagrange_forward(obs3, params))
    ref3 = reference_forward(obs3, params)
    assert out3.shape == (B3,)
    assert jnp.allclose(out3, ref3, atol=3e-2, rtol=3e-2), \
        float(jnp.max(jnp.abs(out3 - ref3)))

    print("KERNEL_OK")
</pallas_src>

<mosaic_0001>
module attributes {stable_mosaic.version = 11 : i64} {
  func.func @_mlp_lagrange_kernel(%arg0: i32, %arg1: memref<8x32xf32, #tpu.memory_space<vmem>>, %arg2: memref<32x64xbf16, #tpu.memory_space<vmem>>, %arg3: memref<1x64xf32, #tpu.memory_space<vmem>>, %arg4: memref<64x64xbf16, #tpu.memory_space<vmem>>, %arg5: memref<1x64xf32, #tpu.memory_space<vmem>>, %arg6: memref<1x64xbf16, #tpu.memory_space<vmem>>, %arg7: memref<1x1xf32, #tpu.memory_space<smem>>, %arg8: memref<1x8xf32, #tpu.memory_space<vmem>>) attributes {dimension_semantics = [#tpu.dimension_semantics<parallel>], iteration_bounds = array<i64: 1>, scalar_prefetch = 0 : i64, scratch_operands = 0 : i64, tpu.core_type = #tpu.core_type<tc>, window_params = [{transform_indices = @transform_0, window_bounds = array<i64: 8, 32>}, {pipeline_mode = #tpu.pipeline_mode<synchronous>, transform_indices = @transform_1, window_bounds = array<i64: 32, 64>}, {pipeline_mode = #tpu.pipeline_mode<synchronous>, transform_indices = @transform_2, window_bounds = array<i64: 1, 64>}, {pipeline_mode = #tpu.pipeline_mode<synchronous>, transform_indices = @transform_3, window_bounds = array<i64: 64, 64>}, {pipeline_mode = #tpu.pipeline_mode<synchronous>, transform_indices = @transform_4, window_bounds = array<i64: 1, 64>}, {pipeline_mode = #tpu.pipeline_mode<synchronous>, transform_indices = @transform_5, window_bounds = array<i64: 1, 64>}, {transform_indices = @transform_6, window_bounds = array<i64: 1, 1>}, {transform_indices = @transform_7, window_bounds = array<i64: 1, 8>}]} {
    %c0 = arith.constant 0 : index
    %c0_0 = arith.constant 0 : index
    %0 = vector.load %arg1[%c0, %c0_0] : memref<8x32xf32, #tpu.memory_space<vmem>>, vector<8x32xf32>
    %1 = arith.truncf %0 : vector<8x32xf32> to vector<8x32xbf16>
    %c0_1 = arith.constant 0 : index
    %c0_2 = arith.constant 0 : index
    %2 = vector.load %arg2[%c0_1, %c0_2] : memref<32x64xbf16, #tpu.memory_space<vmem>>, vector<32x64xbf16>
    %cst = arith.constant dense<0.000000e+00> : vector<8x64xf32>
    %3 = tpu.matmul %1, %2, %cst {dimension_numbers = #tpu.dot_dimension_numbers<[1], [0], [0], [1], [0, 0, 1, 1], [], []>} : vector<8x32xbf16>, vector<32x64xbf16>, vector<8x64xf32> -> vector<8x64xf32>
    %c0_3 = arith.constant 0 : index
    %c0_4 = arith.constant 0 : index
    %4 = vector.load %arg3[%c0_3, %c0_4] : memref<1x64xf32, #tpu.memory_space<vmem>>, vector<1x64xf32>
    %5 = vector.broadcast %4 : vector<1x64xf32> to vector<8x64xf32>
    %6 = arith.addf %3, %5 : vector<8x64xf32>
    %7 = math.tanh %6 : vector<8x64xf32>
    %8 = arith.truncf %7 : vector<8x64xf32> to vector<8x64xbf16>
    %c0_5 = arith.constant 0 : index
    %c0_6 = arith.constant 0 : index
    %9 = vector.load %arg4[%c0_5, %c0_6] : memref<64x64xbf16, #tpu.memory_space<vmem>>, vector<64x64xbf16>
    %cst_7 = arith.constant dense<0.000000e+00> : vector<8x64xf32>
    %10 = tpu.matmul %8, %9, %cst_7 {dimension_numbers = #tpu.dot_dimension_numbers<[1], [0], [0], [1], [0, 0, 1, 1], [], []>} : vector<8x64xbf16>, vector<64x64xbf16>, vector<8x64xf32> -> vector<8x64xf32>
    %c0_8 = arith.constant 0 : index
    %c0_9 = arith.constant 0 : index
    %11 = vector.load %arg5[%c0_8, %c0_9] : memref<1x64xf32, #tpu.memory_space<vmem>>, vector<1x64xf32>
    %12 = vector.broadcast %11 : vector<1x64xf32> to vector<8x64xf32>
    %13 = arith.addf %10, %12 : vector<8x64xf32>
    %14 = math.tanh %13 : vector<8x64xf32>
    %c0_10 = arith.constant 0 : index
    %c0_11 = arith.constant 0 : index
    %15 = vector.load %arg6[%c0_10, %c0_11] : memref<1x64xbf16, #tpu.memory_space<vmem>>, vector<1x64xbf16>
    %16 = arith.truncf %14 : vector<8x64xf32> to vector<8x64xbf16>
    %cst_12 = arith.constant dense<0.000000e+00> : vector<1x8xf32>
    %17 = tpu.matmul %15, %16, %cst_12 {dimension_numbers = #tpu.dot_dimension_numbers<[1], [1], [0], [0], [0, 0, 1, 0], [], []>} : vector<1x64xbf16>, vector<8x64xbf16>, vector<1x8xf32> -> vector<1x8xf32>
    %c0_13 = arith.constant 0 : index
    %c0_14 = arith.constant 0 : index
    %18 = memref.load %arg7[%c0_13, %c0_14] : memref<1x1xf32, #tpu.memory_space<smem>>
    %19 = vector.broadcast %18 : f32 to vector<1x8xf32>
    %20 = arith.addf %17, %19 : vector<1x8xf32>
    %cst_15 = arith.constant 0.000000e+00 : f32
    %21 = vector.broadcast %cst_15 : f32 to vector<1x8xf32>
    %22 = arith.maximumf %20, %21 : vector<1x8xf32>
    %23 = math.absf %20 : vector<1x8xf32>
    %cst_16 = arith.constant 0.000000e+00 : f32
    %24 = vector.broadcast %cst_16 : f32 to vector<1x8xf32>
    %25 = arith.subf %24, %23 : vector<1x8xf32>
    %26 = math.exp %25 : vector<1x8xf32>
    %27 = math.log1p %26 : vector<1x8xf32>
    %28 = arith.addf %22, %27 : vector<1x8xf32>
    %c0_17 = arith.constant 0 : index
    %c0_18 = arith.constant 0 : index
    %29 = vector.load %arg8[%c0_17, %c0_18] : memref<1x8xf32, #tpu.memory_space<vmem>>, vector<1x8xf32>
    tpu.vector_store %arg8[%c0_17, %c0_18], %28 {strides = array<i32>} : memref<1x8xf32, #tpu.memory_space<vmem>>, vector<1x8xf32>,
    return
  }
  func.func @transform_0(%arg0: i32) -> (i32, i32) {
    %c0_i32 = arith.constant 0 : i32
    %c0_i32_0 = arith.constant 0 : i32
    return %arg0, %c0_i32 : i32, i32
  }
  func.func @transform_1(%arg0: i32) -> (i32, i32) {
    %c0_i32 = arith.constant 0 : i32
    %c0_i32_0 = arith.constant 0 : i32
    %c0_i32_1 = arith.constant 0 : i32
    return %c0_i32, %c0_i32_0 : i32, i32
  }
  func.func @transform_2(%arg0: i32) -> (i32, i32) {
    %c0_i32 = arith.constant 0 : i32
    %c0_i32_0 = arith.constant 0 : i32
    %c0_i32_1 = arith.constant 0 : i32
    return %c0_i32, %c0_i32_0 : i32, i32
  }
  func.func @transform_3(%arg0: i32) -> (i32, i32) {
    %c0_i32 = arith.constant 0 : i32
    %c0_i32_0 = arith.constant 0 : i32
    %c0_i32_1 = arith.constant 0 : i32
    return %c0_i32, %c0_i32_0 : i32, i32
  }
  func.func @transform_4(%arg0: i32) -> (i32, i32) {
    %c0_i32 = arith.constant 0 : i32
    %c0_i32_0 = arith.constant 0 : i32
    %c0_i32_1 = arith.constant 0 : i32
    return %c0_i32, %c0_i32_0 : i32, i32
  }
  func.func @transform_5(%arg0: i32) -> (i32, i32) {
    %c0_i32 = arith.constant 0 : i32
    %c0_i32_0 = arith.constant 0 : i32
    %c0_i32_1 = arith.constant 0 : i32
    return %c0_i32, %c0_i32_0 : i32, i32
  }
  func.func @transform_6(%arg0: i32) -> (i32, i32) {
    %c0_i32 = arith.constant 0 : i32
    %c0_i32_0 = arith.constant 0 : i32
    %c0_i32_1 = arith.constant 0 : i32
    return %c0_i32, %c0_i32_0 : i32, i32
  }
  func.func @transform_7(%arg0: i32) -> (i32, i32) {
    %c0_i32 = arith.constant 0 : i32
    %c0_i32_0 = arith.constant 0 : i32
    return %arg0, %c0_i32 : i32, i32
  }
}

</mosaic_0001>

<llo_original>
// kernel: tpu_custom_call.1
$region0: #{tpu_custom_call.1}
  #allocation0 [shape = 'u32[]', space=smem, size = 0x4, offset = 0x4, fixed_abs, tag = 'smem constant byte address 0x4 - core index']
  #allocation1 [shape = 'u32[144,128]{1,0:T(1,128)}', space=vmem, size = 0x12000, scoped, tag = 'internal scratch']
  #allocation2 [shape = 'f32[1,1]{1,0:T(1,128)S(6)}', space=smem, size = 0x200, scoped, tag = 'scoped memory for tpu_custom_call.1']
  %s0 = inlined_call_operand.hbm [shape: f32[8,32], index: 0, kind: input, shape index: {}]
  %s1 = inlined_call_operand.hbm [shape: bf16[32,64], index: 1, kind: input, shape index: {}]
  %s2 = inlined_call_operand.vmem [shape: f32[1,64], index: 2, kind: input, shape index: {}]
  %s3 = inlined_call_operand.hbm [shape: bf16[64,64], index: 3, kind: input, shape index: {}]
  %s4 = inlined_call_operand.vmem [shape: f32[1,64], index: 4, kind: input, shape index: {}]
  %s5 = inlined_call_operand.vmem [shape: bf16[1,64], index: 5, kind: input, shape index: {}]
  %s6 = inlined_call_operand.<no memory space> [shape: f32[1,1], index: 6, kind: input, shape index: {}]
  %s7 = inlined_call_operand.hbm [shape: f32[1,8], index: 7, kind: output, shape index: {}]
  %s8 = sld [smem:[#allocation0]]
  $region50: #{tpu_custom_call.1} parent=0
    _
  %s10 = ssub.s32 1, %s8
  %s11 = scalar_select 0, %s10, %s8
  %12 = sst [smem:[#allocation2]] %s6
  $region1: #{tpu_custom_call.1} parent=0
    #allocation3 [shape = 'u8[4096]{0}', space=vmem, size = 0x1000, scoped, tag = 'input window, operand 0, single buffered']
    #allocation4 [shape = 's32[1]{0}', space=sflag, size = 0x4, scoped, tag = 'scoped memory for tpu_custom_call.1']
    #allocation5 [shape = 's32[1]{0}', space=sflag, size = 0x4, scoped, tag = 'scoped memory for tpu_custom_call.1']
    #allocation6 [shape = 'u8[8192]{0}', space=vmem, size = 0x2000, scoped, tag = 'input window, operand 1, single buffered']
    #allocation7 [shape = 's32[1]{0}', space=sflag, size = 0x4, scoped, tag = 'scoped memory for tpu_custom_call.1']
    #allocation8 [shape = 'u8[16384]{0}', space=vmem, size = 0x4000, scoped, tag = 'input window, operand 3, single buffered']
    #allocation9 [shape = 'u8[512]{0}', space=vmem, size = 0x400, scoped, tag = 'output window, operand 0, single buffered']
    %13 = vsyncpa [#allocation4], 0
    %14 = vsyncpa [#allocation7], 0
    %15 = vsyncpa [#allocation5], 0
    // Predicated region
    $region2: #{tpu_custom_call.1} parent=1 // pred_check
      _
    $region3: #{tpu_custom_call.1} parent=1 // pred_check_branch
      %17 = sbr.rel (0) target = $region5
    $region4: #{tpu_custom_call.1} parent=1 // pred_region
      %s19 = ssub.s32 128, 128
      %20 = vsyncadd [#allocation4], %s19
      %s22 = sshll.u32 [#allocation3], 4
      %s23 = int_to_ptr.vmem [resolvable:$true] %s22
      %25 = dma.hbm_to_vmem [thread:$0]  %s0, 128, %s23, [#allocation4]
    $region5: #{tpu_custom_call.1} parent=1 // pred_fallthru
      _
    // Predicated region
    $region6: #{tpu_custom_call.1} parent=1 // pred_check
      _
    $region7: #{tpu_custom_call.1} parent=1 // pred_check_branch
      %27 = sbr.rel (0) target = $region9
    $region8: #{tpu_custom_call.1} parent=1 // pred_region
      %s29 = ssub.s32 256, 256
      %30 = vsyncadd [#allocation7], %s29
      %s31 = sshll.u32 [#allocation6], 4
      %s32 = int_to_ptr.vmem [resolvable:$true] %s31
      %37 = dma.hbm_to_vmem [thread:$0]  %s1, 256, %s32, [#allocation7], 64, 64, 4
    $region9: #{tpu_custom_call.1} parent=1 // pred_fallthru
      _
    // Predicated region
    $region10: #{tpu_custom_call.1} parent=1 // pred_check
      _
    $region11: #{tpu_custom_call.1} parent=1 // pred_check_branch
      %39 = sbr.rel (0) target = $region13
    $region12: #{tpu_custom_call.1} parent=1 // pred_region
      _
    $region13: #{tpu_custom_call.1} parent=1 // pred_fallthru
      _
    // Predicated region
    $region14: #{tpu_custom_call.1} parent=1 // pred_check
      _
    $region15: #{tpu_custom_call.1} parent=1 // pred_check_branch
      %41 = sbr.rel (0) target = $region17
    $region16: #{tpu_custom_call.1} parent=1 // pred_region
      %s43 = ssub.s32 512, 512
      %44 = vsyncadd [#allocation7], %s43
      %s45 = sshll.u32 [#allocation8], 4
      %s46 = int_to_ptr.vmem [resolvable:$true] %s45
      %51 = dma.hbm_to_vmem [thread:$0]  %s3, 512, %s46, [#allocation7], 64, 64, 4
    $region17: #{tpu_custom_call.1} parent=1 // pred_fallthru
      _
    // Predicated region
    $region18: #{tpu_custom_call.1} parent=1 // pred_check
      _
    $region19: #{tpu_custom_call.1} parent=1 // pred_check_branch
      %53 = sbr.rel (0) target = $region21
    $region20: #{tpu_custom_call.1} parent=1 // pred_region
      _
    $region21: #{tpu_custom_call.1} parent=1 // pred_fallthru
      _
    // Predicated region
    $region22: #{tpu_custom_call.1} parent=1 // pred_check
      _
    $region23: #{tpu_custom_call.1} parent=1 // pred_check_branch
      %55 = sbr.rel (0) target = $region25
    $region24: #{tpu_custom_call.1} parent=1 // pred_region
      _
    $region25: #{tpu_custom_call.1} parent=1 // pred_fallthru
      _
    // Predicated region
    $region26: #{tpu_custom_call.1} parent=1 // pred_check
      _
    $region27: #{tpu_custom_call.1} parent=1 // pred_check_branch
      %57 = sbr.rel (0) target = $region29
    $region28: #{tpu_custom_call.1} parent=1 // pred_region
      _
    $region29: #{tpu_custom_call.1} parent=1 // pred_fallthru
      _
    // Predicated region
    $region30: #{tpu_custom_call.1} parent=1 // pred_check
      _
    $region31: #{tpu_custom_call.1} parent=1 // pred_check_branch
      %59 = sbr.rel (0) target = $region33
    $region32: #{tpu_custom_call.1} parent=1 // pred_region
      %60 = dma.done [#allocation4], 128
    $region33: #{tpu_custom_call.1} parent=1 // pred_fallthru
      _
    // Predicated region
    $region34: #{tpu_custom_call.1} parent=1 // pred_check
      _
    $region35: #{tpu_custom_call.1} parent=1 // pred_check_branch
      %62 = sbr.rel (0) target = $region37
    $region36: #{tpu_custom_call.1} parent=1 // pred_region
      %63 = dma.done [#allocation7], 256
    $region37: #{tpu_custom_call.1} parent=1 // pred_fallthru
      _
    // Predicated region
    $region38: #{tpu_custom_call.1} parent=1 // pred_check
      _
    $region39: #{tpu_custom_call.1} parent=1 // pred_check_branch
      %65 = sbr.rel (0) target = $region41
    $region40: #{tpu_custom_call.1} parent=1 // pred_region
      %66 = dma.done [#allocation7], 512
    $region41: #{tpu_custom_call.1} parent=1 // pred_fallthru
      _
    %v68 = vld [vmem:[#allocation3] sm:$0xff]
    %v69 = vpack.c.bf16 %v68, %v68
    %v70 = vld [vmem:[#allocation6] sm:$0xf]
    %v71 = vld [vmem:[#allocation6 + $0x4] sm:$0xf]
    %v72 = vld [vmem:[#allocation6 + $0x8] sm:$0xf]
    %v73 = vld [vmem:[#allocation6 + $0xc] sm:$0xf]
    %v74 = vld [vmem:[%s2] sm:$0x1]
    %v76 = vlaneseq
    %v77 = vshrl.u32 %v76, 7
    %v78 = vsub.s32 0, %v77
    %v79 = vrot.slane %v74, %v78
    %v85 = vunpack.c.l.b16 %v70
    %v86 = vunpack.c.l.b16 %v71
    %v87 = vunpack.c.l.b16 %v72
    %v88 = vunpack.c.l.b16 %v73
    %v89 = vpack.c.b16 %v86, %v85
    %v90 = vpack.c.b16 %v88, %v87
    %vm93 = vcmask 261120
    %v95 = vsel %vm93, %v69, 0
    %97 = vmatprep.subr.bf16.mxu0 0
    %98 = vmatpush1.bf16.msra.mxu0 %v89
    %99 = vmatprep.subr.bf16.mxu0 0
    %100 = vmatpush1.bf16.msra.mxu0 %v90
    %101 = vmatprep.subr.bf16.mxu0 0
    %102 = vmatpush1.bf16.msra.mxu0 0
    %103 = vmatprep.subr.bf16.mxu0 0
    %104 = vmatpush1.bf16.msra.mxu0 0
    %105 = vmatprep.subr.bf16.mxu0 0
    %106 = vmatpush1.bf16.msra.mxu0 0
    %107 = vmatprep.subr.bf16.mxu0 0
    %108 = vmatpush1.bf16.msra.mxu0 0
    %109 = vmatprep.subr.bf16.mxu0 0
    %110 = vmatpush1.bf16.msra.mxu0 0
    %111 = vmatprep.subr.bf16.mxu0 0
    %112 = vmatpush1.bf16.msra.mxu0 0
    %113 = vmatprep.subr.bf16.mxu0 0
    %114 = vmatpush1.bf16.msra.mxu0 0
    %115 = vmatprep.subr.bf16.mxu0 0
    %116 = vmatpush1.bf16.msra.mxu0 0
    %117 = vmatprep.subr.bf16.mxu0 0
    %118 = vmatpush1.bf16.msra.mxu0 0
    %119 = vmatprep.subr.bf16.mxu0 0
    %120 = vmatpush1.bf16.msra.mxu0 0
    %121 = vmatprep.subr.bf16.mxu0 0
    %122 = vmatpush1.bf16.msra.mxu0 0
    %123 = vmatprep.subr.bf16.mxu0 0
    %124 = vmatpush1.bf16.msra.mxu0 0
    %125 = vmatprep.subr.bf16.mxu0 0
    %126 = vmatpush1.bf16.msra.mxu0 0
    %127 = vmatprep.subr.bf16.mxu0 0
    %128 = vmatpush1.bf16.msra.mxu0 0
    %129 = vmatprep.mubr.bf16.mxu0 0
    %130 = vmatmul.mubr.bf16.gmra.mrb[0].mxu0 %v95
    %v131 = vpop.f32.mrb[0].mxu0
    %v132 = vadd.f32 %v79, %v131
    %v133 = vpop.f32.mrb[0].mxu0
    %v134 = vpop.f32.mrb[0].mxu0
    %v135 = vpop.f32.mrb[0].mxu0
    %136 = vdwg.mxu0
    %v137 = vtanh.pop %v132
    %v138 = vpack.c.bf16 %v137, %v137
    %v139 = vld [vmem:[#allocation8] sm:$0xf]
    %v140 = vld [vmem:[#allocation8 + $0x4] sm:$0xf]
    %v141 = vld [vmem:[#allocation8 + $0x8] sm:$0xf]
    %v142 = vld [vmem:[#allocation8 + $0xc] sm:$0xf]
    %v143 = vld [vmem:[#allocation8 + $0x10] sm:$0xf]
    %v144 = vld [vmem:[#allocation8 + $0x14] sm:$0xf]
    %v145 = vld [vmem:[#allocation8 + $0x18] sm:$0xf]
    %v146 = vld [vmem:[#allocation8 + $0x1c] sm:$0xf]
    %v147 = vld [vmem:[%s4] sm:$0x1]
    %v149 = vlaneseq
    %v150 = vshrl.u32 %v149, 7
    %v151 = vsub.s32 0, %v150
    %v152 = vrot.slane %v147, %v151
    %v162 = vunpack.c.l.b16 %v139
    %v163 = vunpack.c.l.b16 %v140
    %v164 = vunpack.c.l.b16 %v141
    %v165 = vunpack.c.l.b16 %v142
    %v166 = vunpack.c.l.b16 %v143
    %v167 = vunpack.c.l.b16 %v144
    %v168 = vunpack.c.l.b16 %v145
    %v169 = vunpack.c.l.b16 %v146
    %v170 = vpack.c.b16 %v163, %v162
    %v171 = vpack.c.b16 %v165, %v164
    %v172 = vpack.c.b16 %v167, %v166
    %v173 = vpack.c.b16 %v169, %v168
    %vm178 = vcmask 523264
    %v180 = vsel %vm178, %v138, 0
    %182 = vmatprep.subr.bf16.mxu0 0
    %183 = vmatpush1.bf16.msra.mxu0 %v170
    %184 = vmatprep.subr.bf16.mxu0 0
    %185 = vmatpush1.bf16.msra.mxu0 %v171
    %186 = vmatprep.subr.bf16.mxu0 0
    %187 = vmatpush1.bf16.msra.mxu0 %v172
    %188 = vmatprep.subr.bf16.mxu0 0
    %189 = vmatpush1.bf16.msra.mxu0 %v173
    %190 = vmatprep.subr.bf16.mxu0 0
    %191 = vmatpush1.bf16.msra.mxu0 0
    %192 = vmatprep.subr.bf16.mxu0 0
    %193 = vmatpush1.bf16.msra.mxu0 0
    %194 = vmatprep.subr.bf16.mxu0 0
    %195 = vmatpush1.bf16.msra.mxu0 0
    %196 = vmatprep.subr.bf16.mxu0 0
    %197 = vmatpush1.bf16.msra.mxu0 0
    %198 = vmatprep.subr.bf16.mxu0 0
    %199 = vmatpush1.bf16.msra.mxu0 0
    %200 = vmatprep.subr.bf16.mxu0 0
    %201 = vmatpush1.bf16.msra.mxu0 0
    %202 = vmatprep.subr.bf16.mxu0 0
    %203 = vmatpush1.bf16.msra.mxu0 0
    %204 = vmatprep.subr.bf16.mxu0 0
    %205 = vmatpush1.bf16.msra.mxu0 0
    %206 = vmatprep.subr.bf16.mxu0 0
    %207 = vmatpush1.bf16.msra.mxu0 0
    %208 = vmatprep.subr.bf16.mxu0 0
    %209 = vmatpush1.bf16.msra.mxu0 0
    %210 = vmatprep.subr.bf16.mxu0 0
    %211 = vmatpush1.bf16.msra.mxu0 0
    %212 = vmatprep.subr.bf16.mxu0 0
    %213 = vmatpush1.bf16.msra.mxu0 0
    %214 = vmatprep.mubr.bf16.mxu0 0
    %215 = vmatmul.mubr.bf16.gmra.mrb[0].mxu0 %v180
    %v216 = vpop.f32.mrb[0].mxu0
    %v217 = vadd.f32 %v152, %v216
    %v218 = vpop.f32.mrb[0].mxu0
    %v219 = vpop.f32.mrb[0].mxu0
    %v220 = vpop.f32.mrb[0].mxu0
    %221 = vdwg.mxu0
    %v222 = vtanh.pop %v217
    %v223 = vld [vmem:[%s5] sm:$0x1]
    %v224 = vpack.c.bf16 %v222, %v222
    %s225 = sld [smem:[#allocation2]]
    %v226 = vstv %s225
    %v228 = vsel %vm178, %v223, 0
    %v231 = vsel %vm178, %v224, 0
    %233 = vmatprep.subr.bf16.mxu0 0
    %234 = vmatpush1.bf16.xpose.msra.mxu0 %v231
    %235 = vmatprep.subr.bf16.mxu0 0
    %236 = vmatpush1.bf16.xpose.msra.mxu0 0
    %237 = vmatprep.subr.bf16.mxu0 0
    %238 = vmatpush1.bf16.xpose.msra.mxu0 0
    %239 = vmatprep.subr.bf16.mxu0 0
    %240 = vmatpush1.bf16.xpose.msra.mxu0 0
    %241 = vmatprep.subr.bf16.mxu0 0
    %242 = vmatpush1.bf16.xpose.msra.mxu0 0
    %243 = vmatprep.subr.bf16.mxu0 0
    %244 = vmatpush1.bf16.xpose.msra.mxu0 0
    %245 = vmatprep.subr.bf16.mxu0 0
    %246 = vmatpush1.bf16.xpose.msra.mxu0 0
    %247 = vmatprep.subr.bf16.mxu0 0
    %248 = vmatpush1.bf16.xpose.msra.mxu0 0
    %249 = vmatprep.subr.bf16.mxu0 0
    %250 = vmatpush1.bf16.xpose.msra.mxu0 0
    %251 = vmatprep.subr.bf16.mxu0 0
    %252 = vmatpush1.bf16.xpose.msra.mxu0 0
    %253 = vmatprep.subr.bf16.mxu0 0
    %254 = vmatpush1.bf16.xpose.msra.mxu0 0
    %255 = vmatprep.subr.bf16.mxu0 0
    %256 = vmatpush1.bf16.xpose.msra.mxu0 0
    %257 = vmatprep.subr.bf16.mxu0 0
    %258 = vmatpush1.bf16.xpose.msra.mxu0 0
    %259 = vmatprep.subr.bf16.mxu0 0
    %260 = vmatpush1.bf16.xpose.msra.mxu0 0
    %261 = vmatprep.subr.bf16.mxu0 0
    %262 = vmatpush1.bf16.xpose.msra.mxu0 0
    %263 = vmatprep.subr.bf16.mxu0 0
    %264 = vmatpush1.bf16.xpose.msra.mxu0 0
    %265 = vmatprep.mubr.bf16.mxu0 0
    %266 = vmatmul.mubr.bf16.gmra.mrb[0].mxu0 %v228
    %v267 = vpop.f32.mrb[0].mxu0
    %v268 = vadd.f32 %v226, %v267
    %v269 = vpop.f32.mrb[0].mxu0
    %v270 = vpop.f32.mrb[0].mxu0
    %v271 = vpop.f32.mrb[0].mxu0
    %272 = vdwg.mxu0
    %v273 = vmax.f32 %v268, 0.0
    %v274 = vand.u32 2147483647, %v268
    %v275 = vsub.f32 0.0, %v274
    %v276 = vmul.f32 %v275, 1.442695
    %v277 = vpow.pop %v276
    %v278 = vadd.f32 %v277, 1.0
    %v279 = vlog2.pop %v278
    %v280 = vmul.f32 %v279, 0.6931472
    %v281 = vmul.f32 -0.5, %v277
    %v282 = vadd.f32 %v281, 1.0
    %v283 = vmul.f32 %v282, %v277
    %v284 = vand.u32 2147483647, %v277
    %vm285 = vcmp.lt.f32.partialorder %v284, 0.0004427343
    %v286 = vsel %vm285, %v283, %v280
    %v287 = vadd.f32 %v273, %v286
    %vm288 = vcmask 57344
    %289 = vst.msk [vmem:[#allocation9] sm:$0x1] %vm288, %v287
    // Predicated region
    $region42: #{tpu_custom_call.1} parent=1 // pred_check
      _
    $region43: #{tpu_custom_call.1} parent=1 // pred_check_branch
      %291 = sbr.rel (0) target = $region45
    $region44: #{tpu_custom_call.1} parent=1 // pred_region
      %s293 = ssub.s32 16, 16
      %294 = vsyncadd [#allocation5], %s293
      %s296 = sshll.u32 [#allocation9], 4
      %s297 = int_to_ptr.vmem [resolvable:$true] %s296
      %299 = dma.vmem_to_hbm [thread:$0]  %s297, 16, %s7, [#allocation5]
    $region45: #{tpu_custom_call.1} parent=1 // pred_fallthru
      _
    // Predicated region
    $region46: #{tpu_custom_call.1} parent=1 // pred_check
      _
    $region47: #{tpu_custom_call.1} parent=1 // pred_check_branch
      %301 = sbr.rel (0) target = $region49
    $region48: #{tpu_custom_call.1} parent=1 // pred_region
      %302 = dma.done [#allocation5], 16
    $region49: #{tpu_custom_call.1} parent=1 // pred_fallthru
      _
    %303 = vsyncpa [#allocation4], 1
    %304 = vsyncpa [#allocation7], 1
    %305 = vsyncpa [#allocation5], 1

</llo_original>
